<compile_context>
chip_gen: v7x
topology: tpu7x:2x2x1
jax: 0.10.0
libtpu: 0.0.40
codegen_flags: <defaults>
</compile_context>

<pallas_src>
import jax
import jax.numpy as jnp
from jax.experimental import pallas as pl
from jax.experimental.pallas import tpu as pltpu


def _round_up(a: int, b: int) -> int:
    return (a + b - 1) // b * b


def _round_down(a: int, b: int) -> int:
    return a // b * b


# ----------------------------------------------------------------------------
# Generation-aware VMEM budgeting (queried once at import time).
# ----------------------------------------------------------------------------
def _vmem_capacity_bytes() -> int:
    try:
        info = pltpu.get_tpu_info()
        cap = getattr(info, "vmem_capacity_bytes", None)
        if cap:
            return int(cap)
    except Exception:
        pass
    return 64 * 1024 * 1024  # conservative fallback (v7x per-TC VMEM)


_VMEM_CAP = _vmem_capacity_bytes()
# Per-buffer tile budget: 8 MiB on 128-MiB chips (v5e/v6e), 4 MiB on v7x.
_PER_BUF_BUDGET = max(2 * 1024 * 1024, _VMEM_CAP // 16)
# Scoped VMEM limit: in(2x) + out(2x) double-buffered stays well under this.
_VMEM_LIMIT = int(min(_VMEM_CAP // 2, 96 * 1024 * 1024))


# ----------------------------------------------------------------------------
# Kernel
# ----------------------------------------------------------------------------
def _swish_kernel(x_ref, beta_ref, o_ref):
    # x_ref / o_ref: (tm, ts) tile of the flattened input / output.
    # beta_ref: (tm, 1) per-row beta block; broadcasts across the lane axis.
    xf = x_ref[...].astype(jnp.float32)
    bf = beta_ref[...].astype(jnp.float32)
    # jax.nn.sigmoid lowers to lax.logistic -> EUP transcendental (free slot
    # in this memory-bound kernel).
    o_ref[...] = (xf * jax.nn.sigmoid(bf * xf)).astype(o_ref.dtype)


# ----------------------------------------------------------------------------
# Wrapper
# ----------------------------------------------------------------------------
def swish(x, beta, *, tm_max=1024):
    """x: (N, C, D, H, W), beta: (1, C, 1, 1, 1). Returns x * sigmoid(beta*x)."""
    N, C, D, H, W = x.shape
    assert beta.shape == (1, C, 1, 1, 1)
    NC, S = N * C, D * H * W

    x2 = x.reshape(NC, S)
    # Per-row beta: channel beta broadcast over the batch dimension (tiny op).
    beta_rows = jnp.broadcast_to(beta.reshape(1, C), (N, C)).reshape(NC, 1)
    beta_rows = beta_rows.astype(jnp.float32)

    # --- Tile selection by byte budget --------------------------------------
    itemsize = jnp.dtype(x.dtype).itemsize
    sublane = {4: 8, 2: 16, 1: 32}.get(itemsize, 8)  # packed-layout row tile

    tm = min(_round_up(NC, sublane), tm_max)
    # Grow the lane-contiguous axis first (longer DMA bursts).
    ts = min(_round_up(S, 128),
             max(128, _round_down(_PER_BUF_BUDGET // (tm * itemsize), 128)))
    # If one ts block already covers all of S, spend leftover budget on tm.
    if ts >= _round_up(S, 128):
        tm = min(_round_up(NC, sublane),
                 max(tm, _round_down(_PER_BUF_BUDGET // (ts * itemsize), sublane)))

    grid = (pl.cdiv(NC, tm), pl.cdiv(S, ts))

    out2 = pl.pallas_call(
        _swish_kernel,
        out_shape=jax.ShapeDtypeStruct((NC, S), x.dtype),
        grid_spec=pltpu.PrefetchScalarGridSpec(
            num_scalar_prefetch=0,
            grid=grid,
            in_specs=[
                # Streaming input tile (partial last blocks are masked).
                pl.BlockSpec((tm, ts), lambda i, j: (i, j)),
                # beta: one (tm, 1) block per row-block, constant over j.
                pl.BlockSpec((tm, 1), lambda i, j: (i, 0)),
            ],
            out_specs=pl.BlockSpec((tm, ts), lambda i, j: (i, j)),
        ),
        compiler_params=pltpu.CompilerParams(
            dimension_semantics=("parallel", "parallel"),
            vmem_limit_bytes=_VMEM_LIMIT,
        ),
    )(x2, beta_rows)

    return out2.reshape(N, C, D, H, W)


if __name__ == "__main__":
    key = jax.random.PRNGKey(0)
    k1, k2 = jax.random.split(key)

    swish_fn = jax.jit(swish)

    def reference(x, beta):
        return x * jax.nn.sigmoid(beta * x)

    # Case 1: small aligned NCDHW input, beta initialized to ones
    # (matches nn.init.ones_(self.beta)).
    N, C, D, H, W = 2, 4, 4, 8, 16
    x1 = jax.random.normal(k1, (N, C, D, H, W), dtype=jnp.float32)
    beta1 = jnp.ones((1, C, 1, 1, 1), dtype=jnp.float32)
    out1 = jax.block_until_ready(swish_fn(x1, beta1))
    assert out1.shape == x1.shape
    assert jnp.allclose(out1, reference(x1, beta1), atol=1e-5, rtol=1e-5)

    # Case 2: ragged shape (exercises partial/masked blocks) + non-unit beta.
    N, C, D, H, W = 2, 3, 2, 5, 13
    x2 = jax.random.normal(k2, (N, C, D, H, W), dtype=jnp.float32)
    beta2 = jnp.linspace(0.5, 1.5, C, dtype=jnp.float32).reshape(1, C, 1, 1, 1)
    out2 = jax.block_until_ready(swish_fn(x2, beta2))
    assert out2.shape == x2.shape
    assert jnp.allclose(out2, reference(x2, beta2), atol=1e-5, rtol=1e-5)

    print("KERNEL_OK")
</pallas_src>

<mosaic_0001>
module attributes {stable_mosaic.version = 11 : i64} {
  func.func @_swish_kernel(%arg0: i32, %arg1: i32, %arg2: memref<8x512xf32, #tpu.memory_space<vmem>>, %arg3: memref<8x1xf32, #tpu.memory_space<vmem>>, %arg4: memref<8x512xf32, #tpu.memory_space<vmem>>) attributes {dimension_semantics = [#tpu.dimension_semantics<parallel>, #tpu.dimension_semantics<parallel>], iteration_bounds = array<i64: 1, 1>, scalar_prefetch = 0 : i64, scratch_operands = 0 : i64, tpu.core_type = #tpu.core_type<tc>, window_params = [{transform_indices = @transform_0, window_bounds = array<i64: 8, 512>}, {transform_indices = @transform_1, window_bounds = array<i64: 8, 1>}, {transform_indices = @transform_2, window_bounds = array<i64: 8, 512>}]} {
    %c0 = arith.constant 0 : index
    %c0_0 = arith.constant 0 : index
    %0 = vector.load %arg2[%c0, %c0_0] : memref<8x512xf32, #tpu.memory_space<vmem>>, vector<8x512xf32>
    %c0_1 = arith.constant 0 : index
    %c0_2 = arith.constant 0 : index
    %1 = vector.load %arg3[%c0_1, %c0_2] : memref<8x1xf32, #tpu.memory_space<vmem>>, vector<8x1xf32>
    %2 = vector.broadcast %1 : vector<8x1xf32> to vector<8x512xf32>
    %3 = arith.mulf %2, %0 : vector<8x512xf32>
    %4 = arith.negf %3 : vector<8x512xf32>
    %5 = math.exp %4 : vector<8x512xf32>
    %cst = arith.constant 1.000000e+00 : f32
    %6 = vector.broadcast %cst : f32 to vector<8x512xf32>
    %7 = arith.addf %6, %5 : vector<8x512xf32>
    %8 = arith.divf %6, %7 : vector<8x512xf32>
    %9 = arith.mulf %0, %8 : vector<8x512xf32>
    %c0_3 = arith.constant 0 : index
    %c0_4 = arith.constant 0 : index
    %10 = vector.load %arg4[%c0_3, %c0_4] : memref<8x512xf32, #tpu.memory_space<vmem>>, vector<8x512xf32>
    tpu.vector_store %arg4[%c0_3, %c0_4], %9 {strides = array<i32>} : memref<8x512xf32, #tpu.memory_space<vmem>>, vector<8x512xf32>,
    return
  }
  func.func @transform_0(%arg0: i32, %arg1: i32) -> (i32, i32) {
    %c0_i32 = arith.constant 0 : i32
    return %arg0, %arg1 : i32, i32
  }
  func.func @transform_1(%arg0: i32, %arg1: i32) -> (i32, i32) {
    %c0_i32 = arith.constant 0 : i32
    %c0_i32_0 = arith.constant 0 : i32
    return %arg0, %c0_i32 : i32, i32
  }
  func.func @transform_2(%arg0: i32, %arg1: i32) -> (i32, i32) {
    %c0_i32 = arith.constant 0 : i32
    return %arg0, %arg1 : i32, i32
  }
}

</mosaic_0001>

<llo_original>
// kernel: swish.1
$region0: #{swish.1}
  #allocation0 [shape = 'u32[]', space=smem, size = 0x4, offset = 0x4, fixed_abs, tag = 'smem constant byte address 0x4 - core index']
  #allocation1 [shape = 'u32[144,128]{1,0:T(1,128)}', space=vmem, size = 0x12000, scoped, tag = 'internal scratch']
  %s0 = inlined_call_operand.vmem [shape: f32[8,512], index: 0, kind: input, shape index: {}]
  %s1 = inlined_call_operand.vmem [shape: f32[8,1], index: 1, kind: input, shape index: {}]
  %s2 = inlined_call_operand.vmem [shape: f32[8,512], index: 2, kind: output, shape index: {}]
  %s3 = sld [smem:[#allocation0]]
  $region18: #{swish.1} parent=0
    _
  %s5 = ssub.s32 1, %s3
  %s6 = scalar_select 0, %s5, %s3
  // Predicated region
  $region2: #{swish.1} parent=0 // pred_check
    _
  $region3: #{swish.1} parent=0 // pred_check_branch
    %8 = sbr.rel (0) target = $region5
  $region4: #{swish.1} parent=0 // pred_region
    _
  $region5: #{swish.1} parent=0 // pred_fallthru
    _
  // Predicated region
  $region6: #{swish.1} parent=0 // pred_check
    _
  $region7: #{swish.1} parent=0 // pred_check_branch
    %10 = sbr.rel (0) target = $region9
  $region8: #{swish.1} parent=0 // pred_region
    _
  $region9: #{swish.1} parent=0 // pred_fallthru
    _
  %v11 = vld [vmem:[%s0] sm:$0xff]
  %v12 = vld [vmem:[%s0 + $0x8] sm:$0xff]
  %v13 = vld [vmem:[%s0 + $0x10] sm:$0xff]
  %v14 = vld [vmem:[%s0 + $0x18] sm:$0xff]
  %v15 = vld [vmem:[%s1] sm:$0xff]
  %17 = vset.pattern.permute.xlu0 0
  %18 = vperm.xlu0 %17, %v15
  %v19 = vpop.permute.xlu0 %18
  %v21 = vmul.f32 %v19, %v11
  %v22 = vmul.f32 %v19, %v12
  %v23 = vmul.f32 %v19, %v13
  %v24 = vmul.f32 %v19, %v14
  %v25 = vxor.u32 %v21, 2147483648
  %v26 = vxor.u32 %v22, 2147483648
  %v27 = vxor.u32 %v23, 2147483648
  %v28 = vxor.u32 %v24, 2147483648
  %v29 = vmul.f32 %v25, 1.442695
  %v30 = vpow.pop %v29
  %v31 = vmul.f32 %v26, 1.442695
  %v32 = vpow.pop %v31
  %v33 = vmul.f32 %v27, 1.442695
  %v34 = vpow.pop %v33
  %v35 = vmul.f32 %v28, 1.442695
  %v36 = vpow.pop %v35
  %v37 = vadd.f32 %v30, 1.0
  %v38 = vadd.f32 %v32, 1.0
  %v39 = vadd.f32 %v34, 1.0
  %v40 = vadd.f32 %v36, 1.0
  %v41 = vrcp.pop %v37
  %v42 = vmul.f32 1.0, %v41
  %v43 = vrcp.pop %v38
  %v44 = vmul.f32 1.0, %v43
  %v45 = vrcp.pop %v39
  %v46 = vmul.f32 1.0, %v45
  %v47 = vrcp.pop %v40
  %v48 = vmul.f32 1.0, %v47
  %v49 = vmul.f32 %v11, %v42
  %v50 = vmul.f32 %v12, %v44
  %v51 = vmul.f32 %v13, %v46
  %v52 = vmul.f32 %v14, %v48
  %53 = vst [vmem:[%s2] sm:$0xff] %v49
  %54 = vst [vmem:[%s2 + $0x8] sm:$0xff] %v50
  %55 = vst [vmem:[%s2 + $0x10] sm:$0xff] %v51
  %56 = vst [vmem:[%s2 + $0x18] sm:$0xff] %v52
  // Predicated region
  $region10: #{swish.1} parent=0 // pred_check
    _
  $region11: #{swish.1} parent=0 // pred_check_branch
    %58 = sbr.rel (0) target = $region13
  $region12: #{swish.1} parent=0 // pred_region
    _
  $region13: #{swish.1} parent=0 // pred_fallthru
    _
  // Predicated region
  $region14: #{swish.1} parent=0 // pred_check
    _
  $region15: #{swish.1} parent=0 // pred_check_branch
    %60 = sbr.rel (0) target = $region17
  $region16: #{swish.1} parent=0 // pred_region
    _
  $region17: #{swish.1} parent=0 // pred_fallthru
    _

</llo_original>
